<compile_context>
chip_gen: v7x
topology: tpu7x:2x2x1
jax: 0.10.0
libtpu: 0.0.40
codegen_flags: <defaults>
</compile_context>

<pallas_src>
import jax
import jax.numpy as jnp
from jax.experimental import pallas as pl
from jax.experimental.pallas import tpu as pltpu

_MAX_ROW_TILE = 256                 # rows of logits per grid step
_VMEM_LIMIT_BYTES = 32 * 1024 * 1024


def _round_up(x, m):
    return (x + m - 1) // m * m


# ----------------------------- kernels --------------------------------------

def _logits_kernel(idx_ref, table_ref, logits_ref):
    """One full (tm, V) logits tile per grid step via one-hot @ table (MXU)."""
    ids = idx_ref[...]                                        # (tm, 1) int32
    tm = ids.shape[0]
    v = table_ref.shape[1]
    cols = jax.lax.broadcasted_iota(jnp.int32, (tm, v), 1)
    onehot = (cols == ids).astype(jnp.float32)                # (tm, V)
    logits_ref[...] = jnp.dot(onehot, table_ref[...],
                              preferred_element_type=jnp.float32)


def _logits_loss_kernel(idx_ref, tgt_ref, table_ref, logits_ref, nll_ref):
    """Logits tile + per-row NLL (log-sum-exp - target logit), fully batched."""
    ids = idx_ref[...]                                        # (tm, 1) int32
    tgts = tgt_ref[...]                                       # (tm, 1) int32
    tm = ids.shape[0]
    v = table_ref.shape[1]
    cols = jax.lax.broadcasted_iota(jnp.int32, (tm, v), 1)
    onehot = (cols == ids).astype(jnp.float32)                # (tm, V)
    logits = jnp.dot(onehot, table_ref[...],
                     preferred_element_type=jnp.float32)      # (tm, V)
    logits_ref[...] = logits

    # Tile-level cross-entropy pieces (VPU/EUP/XLU work over the whole tile).
    m = jnp.max(logits, axis=-1, keepdims=True)               # (tm, 1)
    lse = jnp.log(jnp.sum(jnp.exp(logits - m), axis=-1, keepdims=True)) + m
    tgt_logit = jnp.sum(jnp.where(cols == tgts, logits, 0.0),
                        axis=-1, keepdims=True)               # (tm, 1)
    nll_ref[...] = lse - tgt_logit                            # per-row NLL


# ----------------------------- wrapper ---------------------------------------

def bigram_forward(idx, table, targets=None):
    """Reproduces BigramLanguageModel.forward.

    idx:     (B, T) int token ids in [0, V)
    table:   (V, V) float32 embedding table
    targets: optional (B, T) int token ids in [0, V)

    Returns (logits, loss):
      targets is None -> logits (B, T, V), loss None
      else            -> logits (B*T, V),  loss scalar (mean cross-entropy)
    """
    B, T = idx.shape
    V = table.shape[0]
    N = B * T

    tm = min(_MAX_ROW_TILE, _round_up(N, 8))
    n_pad = _round_up(N, tm)
    n_tiles = n_pad // tm

    idx_col = idx.reshape(N, 1).astype(jnp.int32)
    if n_pad != N:
        idx_col = jnp.pad(idx_col, ((0, n_pad - N), (0, 0)))

    idx_spec = pl.BlockSpec((tm, 1), lambda i: (i, 0))
    table_spec = pl.BlockSpec((V, V), lambda i: (0, 0))       # resident in VMEM
    logits_spec = pl.BlockSpec((tm, V), lambda i: (i, 0))
    compiler_params = pltpu.CompilerParams(
        dimension_semantics=("parallel",),                    # tiles independent
        vmem_limit_bytes=_VMEM_LIMIT_BYTES,
    )

    if targets is None:
        logits = pl.pallas_call(
            _logits_kernel,
            out_shape=jax.ShapeDtypeStruct((n_pad, V), jnp.float32),
            grid_spec=pltpu.PrefetchScalarGridSpec(
                num_scalar_prefetch=0,
                grid=(n_tiles,),
                in_specs=[idx_spec, table_spec],
                out_specs=logits_spec,
            ),
            compiler_params=compiler_params,
            cost_estimate=pl.CostEstimate(
                flops=2 * n_pad * V * V,
                transcendentals=0,
                bytes_accessed=V * V * 4 + n_pad * 4 + n_pad * V * 4,
            ),
        )(idx_col, table)
        return logits[:N].reshape(B, T, V), None

    tgt_col = targets.reshape(N, 1).astype(jnp.int32)
    if n_pad != N:
        tgt_col = jnp.pad(tgt_col, ((0, n_pad - N), (0, 0)))

    logits, nll = pl.pallas_call(
        _logits_loss_kernel,
        out_shape=(
            jax.ShapeDtypeStruct((n_pad, V), jnp.float32),
            jax.ShapeDtypeStruct((n_pad, 1), jnp.float32),
        ),
        grid_spec=pltpu.PrefetchScalarGridSpec(
            num_scalar_prefetch=0,
            grid=(n_tiles,),
            in_specs=[idx_spec, idx_spec, table_spec],        # idx, targets share layout
            out_specs=(logits_spec, pl.BlockSpec((tm, 1), lambda i: (i, 0))),
        ),
        compiler_params=compiler_params,
        cost_estimate=pl.CostEstimate(
            flops=2 * n_pad * V * V + 6 * n_pad * V,
            transcendentals=n_pad * V,
            bytes_accessed=V * V * 4 + 2 * n_pad * 4 + n_pad * V * 4 + n_pad * 4,
        ),
    )(idx_col, tgt_col, table)

    # Mean over the N valid rows only (padded rows sliced off -> never in mean).
    loss = jnp.sum(nll[:N, 0]) * (1.0 / N)
    return logits[:N], loss


# ----------------------------- main ------------------------------------------

if __name__ == "__main__":
    key = jax.random.PRNGKey(0)
    k_tab, k_idx, k_tgt = jax.random.split(key, 3)

    vocab_size = 128       # lane-friendly vocab
    B, T = 2, 8            # N = B*T = 16 rows

    # nn.Embedding default init: N(0, 1)
    table = jax.random.normal(k_tab, (vocab_size, vocab_size), dtype=jnp.float32)
    idx = jax.random.randint(k_idx, (B, T), 0, vocab_size, dtype=jnp.int32)
    targets = jax.random.randint(k_tgt, (B, T), 0, vocab_size, dtype=jnp.int32)

    # --- forward with targets (training path) ---
    logits, loss = bigram_forward(idx, table, targets)
    jax.block_until_ready(logits)
    jax.block_until_ready(loss)

    # --- forward without targets (inference path) ---
    logits_inf, loss_inf = bigram_forward(idx, table, None)
    jax.block_until_ready(logits_inf)

    # pure-JAX reference check
    ref_logits = table[idx.reshape(-1)]                       # (N, V)
    ref_lse = jax.scipy.special.logsumexp(ref_logits, axis=-1)
    ref_loss = jnp.mean(ref_lse - ref_logits[jnp.arange(B * T),
                                             targets.reshape(-1)])
    assert logits.shape == (B * T, vocab_size)
    assert logits_inf.shape == (B, T, vocab_size)
    assert loss_inf is None
    assert jnp.allclose(logits, ref_logits, atol=1e-5)
    assert jnp.allclose(logits_inf.reshape(B * T, vocab_size), ref_logits, atol=1e-5)
    assert jnp.allclose(loss, ref_loss, atol=1e-4)

    # TODO(synk): generate() uses torch.multinomial host-side autoregressive
    # sampling; not part of the forward hot path, intentionally not implemented.

    print("KERNEL_OK")
</pallas_src>

<mosaic_0001>
module attributes {stable_mosaic.version = 11 : i64} {
  func.func @_logits_loss_kernel(%arg0: i32, %arg1: memref<16x1xi32, #tpu.memory_space<vmem>>, %arg2: memref<16x1xi32, #tpu.memory_space<vmem>>, %arg3: memref<128x128xf32, #tpu.memory_space<vmem>>, %arg4: memref<16x128xf32, #tpu.memory_space<vmem>>, %arg5: memref<16x1xf32, #tpu.memory_space<vmem>>) attributes {dimension_semantics = [#tpu.dimension_semantics<parallel>], iteration_bounds = array<i64: 1>, scalar_prefetch = 0 : i64, scratch_operands = 0 : i64, tpu.core_type = #tpu.core_type<tc>, window_params = [{transform_indices = @transform_0, window_bounds = array<i64: 16, 1>}, {transform_indices = @transform_1, window_bounds = array<i64: 16, 1>}, {pipeline_mode = #tpu.pipeline_mode<synchronous>, transform_indices = @transform_2, window_bounds = array<i64: 128, 128>}, {transform_indices = @transform_3, window_bounds = array<i64: 16, 128>}, {transform_indices = @transform_4, window_bounds = array<i64: 16, 1>}]} {
    %c0 = arith.constant 0 : index
    %c0_0 = arith.constant 0 : index
    %0 = vector.load %arg1[%c0, %c0_0] : memref<16x1xi32, #tpu.memory_space<vmem>>, vector<16x1xi32>
    %c0_1 = arith.constant 0 : index
    %c0_2 = arith.constant 0 : index
    %1 = vector.load %arg2[%c0_1, %c0_2] : memref<16x1xi32, #tpu.memory_space<vmem>>, vector<16x1xi32>
    %2 = tpu.iota {dimensions = array<i32: 1>} : vector<16x128xi32>
    %3 = vector.broadcast %0 : vector<16x1xi32> to vector<16x128xi32>
    %4 = arith.cmpi eq, %2, %3 : vector<16x128xi32>
    %5 = arith.extui %4 : vector<16x128xi1> to vector<16x128xi32>
    %6 = arith.sitofp %5 : vector<16x128xi32> to vector<16x128xf32>
    %c0_3 = arith.constant 0 : index
    %c0_4 = arith.constant 0 : index
    %7 = vector.load %arg3[%c0_3, %c0_4] : memref<128x128xf32, #tpu.memory_space<vmem>>, vector<128x128xf32>
    %cst = arith.constant dense<0.000000e+00> : vector<16x128xf32>
    %8 = tpu.matmul %6, %7, %cst {dimension_numbers = #tpu.dot_dimension_numbers<[1], [0], [0], [1], [0, 0, 1, 1], [], []>} : vector<16x128xf32>, vector<128x128xf32>, vector<16x128xf32> -> vector<16x128xf32>
    %c0_5 = arith.constant 0 : index
    %c0_6 = arith.constant 0 : index
    %9 = vector.load %arg4[%c0_5, %c0_6] : memref<16x128xf32, #tpu.memory_space<vmem>>, vector<16x128xf32>
    tpu.vector_store %arg4[%c0_5, %c0_6], %8 {strides = array<i32>} : memref<16x128xf32, #tpu.memory_space<vmem>>, vector<16x128xf32>,
    %cst_7 = arith.constant dense<0xFF800000> : vector<16xf32>
    %10 = vector.multi_reduction <maximumf>, %8, %cst_7 [1] : vector<16x128xf32> to vector<16xf32>
    %11 = vector.shape_cast %10 : vector<16xf32> to vector<16x1xf32>
    %12 = vector.broadcast %11 : vector<16x1xf32> to vector<16x128xf32>
    %13 = arith.subf %8, %12 : vector<16x128xf32>
    %14 = math.exp %13 : vector<16x128xf32>
    %cst_8 = arith.constant dense<0.000000e+00> : vector<16xf32>
    %15 = vector.multi_reduction <add>, %14, %cst_8 [1] : vector<16x128xf32> to vector<16xf32>
    %16 = vector.shape_cast %15 : vector<16xf32> to vector<16x1xf32>
    %17 = math.log %16 : vector<16x1xf32>
    %18 = arith.addf %17, %11 : vector<16x1xf32>
    %19 = vector.broadcast %1 : vector<16x1xi32> to vector<16x128xi32>
    %20 = arith.cmpi eq, %2, %19 : vector<16x128xi32>
    %cst_9 = arith.constant 0.000000e+00 : f32
    %21 = vector.broadcast %cst_9 : f32 to vector<16x128xf32>
    %22 = arith.select %20, %8, %21 : vector<16x128xi1>, vector<16x128xf32>
    %cst_10 = arith.constant dense<0.000000e+00> : vector<16xf32>
    %23 = vector.multi_reduction <add>, %22, %cst_10 [1] : vector<16x128xf32> to vector<16xf32>
    %24 = vector.shape_cast %23 : vector<16xf32> to vector<16x1xf32>
    %25 = arith.subf %18, %24 : vector<16x1xf32>
    %c0_11 = arith.constant 0 : index
    %c0_12 = arith.constant 0 : index
    %26 = vector.load %arg5[%c0_11, %c0_12] : memref<16x1xf32, #tpu.memory_space<vmem>>, vector<16x1xf32>
    tpu.vector_store %arg5[%c0_11, %c0_12], %25 {strides = array<i32>} : memref<16x1xf32, #tpu.memory_space<vmem>>, vector<16x1xf32>,
    return
  }
  func.func @transform_0(%arg0: i32) -> (i32, i32) {
    %c0_i32 = arith.constant 0 : i32
    %c0_i32_0 = arith.constant 0 : i32
    return %arg0, %c0_i32 : i32, i32
  }
  func.func @transform_1(%arg0: i32) -> (i32, i32) {
    %c0_i32 = arith.constant 0 : i32
    %c0_i32_0 = arith.constant 0 : i32
    return %arg0, %c0_i32 : i32, i32
  }
  func.func @transform_2(%arg0: i32) -> (i32, i32) {
    %c0_i32 = arith.constant 0 : i32
    %c0_i32_0 = arith.constant 0 : i32
    %c0_i32_1 = arith.constant 0 : i32
    return %c0_i32, %c0_i32_0 : i32, i32
  }
  func.func @transform_3(%arg0: i32) -> (i32, i32) {
    %c0_i32 = arith.constant 0 : i32
    %c0_i32_0 = arith.constant 0 : i32
    return %arg0, %c0_i32 : i32, i32
  }
  func.func @transform_4(%arg0: i32) -> (i32, i32) {
    %c0_i32 = arith.constant 0 : i32
    %c0_i32_0 = arith.constant 0 : i32
    return %arg0, %c0_i32 : i32, i32
  }
}

</mosaic_0001>

<llo_original>
// kernel: tpu_custom_call.1
$region0: #{tpu_custom_call.1}
  #allocation0 [shape = 'u32[]', space=smem, size = 0x4, offset = 0x4, fixed_abs, tag = 'smem constant byte address 0x4 - core index']
  #allocation1 [shape = 'u32[144,128]{1,0:T(1,128)}', space=vmem, size = 0x12000, scoped, tag = 'internal scratch']
  %s0 = inlined_call_operand.vmem [shape: s32[16,1], index: 0, kind: input, shape index: {}]
  %s1 = inlined_call_operand.vmem [shape: s32[16,1], index: 1, kind: input, shape index: {}]
  %s2 = inlined_call_operand.hbm [shape: f32[128,128], index: 2, kind: input, shape index: {}]
  %s3 = inlined_call_operand.hbm [shape: f32[16,128], index: 3, kind: output, shape index: {0}]
  %s4 = inlined_call_operand.vmem [shape: f32[16,1], index: 4, kind: output, shape index: {1}]
  %5 = xla_tuple %s3, %s4
  %s6 = sld [smem:[#allocation0]]
  $region34: #{tpu_custom_call.1} parent=0
    _
  %s8 = ssub.s32 1, %s6
  %s9 = scalar_select 0, %s8, %s6
  $region1: #{tpu_custom_call.1} parent=0
    #allocation2 [shape = 'u8[65536]{0}', space=vmem, size = 0x10000, scoped, tag = 'input window, operand 2, single buffered']
    #allocation3 [shape = 's32[1]{0}', space=sflag, size = 0x4, scoped, tag = 'scoped memory for tpu_custom_call.1']
    #allocation4 [shape = 's32[1]{0}', space=sflag, size = 0x4, scoped, tag = 'scoped memory for tpu_custom_call.1']
    #allocation5 [shape = 'u8[8192]{0}', space=vmem, size = 0x2000, scoped, tag = 'output window, operand 0, single buffered']
    %10 = vsyncpa [#allocation3], 0
    %11 = vsyncpa [#allocation4], 0
    // Predicated region
    $region2: #{tpu_custom_call.1} parent=1 // pred_check
      _
    $region3: #{tpu_custom_call.1} parent=1 // pred_check_branch
      %13 = sbr.rel (0) target = $region5
    $region4: #{tpu_custom_call.1} parent=1 // pred_region
      _
    $region5: #{tpu_custom_call.1} parent=1 // pred_fallthru
      _
    // Predicated region
    $region6: #{tpu_custom_call.1} parent=1 // pred_check
      _
    $region7: #{tpu_custom_call.1} parent=1 // pred_check_branch
      %15 = sbr.rel (0) target = $region9
    $region8: #{tpu_custom_call.1} parent=1 // pred_region
      _
    $region9: #{tpu_custom_call.1} parent=1 // pred_fallthru
      _
    // Predicated region
    $region10: #{tpu_custom_call.1} parent=1 // pred_check
      _
    $region11: #{tpu_custom_call.1} parent=1 // pred_check_branch
      %17 = sbr.rel (0) target = $region13
    $region12: #{tpu_custom_call.1} parent=1 // pred_region
      %s19 = ssub.s32 2048, 2048
      %20 = vsyncadd [#allocation3], %s19
      %s21 = sshll.u32 [#allocation2], 4
      %s22 = int_to_ptr.vmem [resolvable:$true] %s21
      %27 = dma.hbm_to_vmem [thread:$0]  %s2, 2048, %s22, [#allocation3], 128, 128, 8
    $region13: #{tpu_custom_call.1} parent=1 // pred_fallthru
      _
    // Predicated region
    $region14: #{tpu_custom_call.1} parent=1 // pred_check
      _
    $region15: #{tpu_custom_call.1} parent=1 // pred_check_branch
      %29 = sbr.rel (0) target = $region17
    $region16: #{tpu_custom_call.1} parent=1 // pred_region
      %30 = dma.done [#allocation3], 2048
    $region17: #{tpu_custom_call.1} parent=1 // pred_fallthru
      _
    %v31 = vld [vmem:[%s0] sm:$0xff]
    %v32 = vld [vmem:[%s0 + $0x8] sm:$0xff]
    %v33 = vld [vmem:[%s1] sm:$0xff]
    %v34 = vld [vmem:[%s1 + $0x8] sm:$0xff]
    %v35 = vlaneseq
    %v36 = vand.u32 %v35, 127
    %37 = vset.pattern.permute.xlu0 0
    %38 = vperm.xlu0 %37, %v31
    %v39 = vpop.permute.xlu0 %38
    %40 = vset.pattern.permute.xlu0 0
    %41 = vperm.xlu0 %40, %v32
    %v42 = vpop.permute.xlu0 %41
    %vm43 = vcmp.eq.s32.totalorder %v36, %v39
    %vm44 = vcmp.eq.s32.totalorder %v36, %v42
    %v45 = vsel %vm43, 1, 0
    %v46 = vsel %vm44, 1, 0
    %v47 = vcvt.s32.f32 %v45
    %v48 = vcvt.s32.f32 %v46
    %v49 = vld [vmem:[#allocation2] sm:$0xff]
    %v50 = vld [vmem:[#allocation2 + $0x8] sm:$0xff]
    %v51 = vld [vmem:[#allocation2 + $0x10] sm:$0xff]
    %v52 = vld [vmem:[#allocation2 + $0x18] sm:$0xff]
    %v53 = vld [vmem:[#allocation2 + $0x20] sm:$0xff]
    %v54 = vld [vmem:[#allocation2 + $0x28] sm:$0xff]
    %v55 = vld [vmem:[#allocation2 + $0x30] sm:$0xff]
    %v56 = vld [vmem:[#allocation2 + $0x38] sm:$0xff]
    %v57 = vld [vmem:[#allocation2 + $0x40] sm:$0xff]
    %v58 = vld [vmem:[#allocation2 + $0x48] sm:$0xff]
    %v59 = vld [vmem:[#allocation2 + $0x50] sm:$0xff]
    %v60 = vld [vmem:[#allocation2 + $0x58] sm:$0xff]
    %v61 = vld [vmem:[#allocation2 + $0x60] sm:$0xff]
    %v62 = vld [vmem:[#allocation2 + $0x68] sm:$0xff]
    %v63 = vld [vmem:[#allocation2 + $0x70] sm:$0xff]
    %v64 = vld [vmem:[#allocation2 + $0x78] sm:$0xff]
    %65 = vmatprep.subr.mxu0 0.0
    %66 = vmatpush1.msra.mxu0 %v49
    %67 = vmatprep.subr.mxu0 0.0
    %68 = vmatpush1.msra.mxu0 %v50
    %69 = vmatprep.subr.mxu0 0.0
    %70 = vmatpush1.msra.mxu0 %v51
    %71 = vmatprep.subr.mxu0 0.0
    %72 = vmatpush1.msra.mxu0 %v52
    %73 = vmatprep.subr.mxu0 0.0
    %74 = vmatpush1.msra.mxu0 %v53
    %75 = vmatprep.subr.mxu0 0.0
    %76 = vmatpush1.msra.mxu0 %v54
    %77 = vmatprep.subr.mxu0 0.0
    %78 = vmatpush1.msra.mxu0 %v55
    %79 = vmatprep.subr.mxu0 0.0
    %80 = vmatpush1.msra.mxu0 %v56
    %81 = vmatprep.subr.mxu0 0.0
    %82 = vmatpush1.msra.mxu0 %v57
    %83 = vmatprep.subr.mxu0 0.0
    %84 = vmatpush1.msra.mxu0 %v58
    %85 = vmatprep.subr.mxu0 0.0
    %86 = vmatpush1.msra.mxu0 %v59
    %87 = vmatprep.subr.mxu0 0.0
    %88 = vmatpush1.msra.mxu0 %v60
    %89 = vmatprep.subr.mxu0 0.0
    %90 = vmatpush1.msra.mxu0 %v61
    %91 = vmatprep.subr.mxu0 0.0
    %92 = vmatpush1.msra.mxu0 %v62
    %93 = vmatprep.subr.mxu0 0.0
    %94 = vmatpush1.msra.mxu0 %v63
    %95 = vmatprep.subr.mxu0 0.0
    %96 = vmatpush1.msra.mxu0 %v64
    %97 = vmatprep.subr.mxu0 0.0
    %98 = vmatpush1.msra.mxu0 0.0
    %99 = vmatprep.subr.mxu0 0.0
    %100 = vmatpush1.msra.mxu0 0.0
    %101 = vmatprep.subr.mxu0 0.0
    %102 = vmatpush1.msra.mxu0 0.0
    %103 = vmatprep.subr.mxu0 0.0
    %104 = vmatpush1.msra.mxu0 0.0
    %105 = vmatprep.subr.mxu0 0.0
    %106 = vmatpush1.msra.mxu0 0.0
    %107 = vmatprep.subr.mxu0 0.0
    %108 = vmatpush1.msra.mxu0 0.0
    %109 = vmatprep.subr.mxu0 0.0
    %110 = vmatpush1.msra.mxu0 0.0
    %111 = vmatprep.subr.mxu0 0.0
    %112 = vmatpush1.msra.mxu0 0.0
    %113 = vmatprep.subr.mxu0 0.0
    %114 = vmatpush1.msra.mxu0 0.0
    %115 = vmatprep.subr.mxu0 0.0
    %116 = vmatpush1.msra.mxu0 0.0
    %117 = vmatprep.subr.mxu0 0.0
    %118 = vmatpush1.msra.mxu0 0.0
    %119 = vmatprep.subr.mxu0 0.0
    %120 = vmatpush1.msra.mxu0 0.0
    %121 = vmatprep.subr.mxu0 0.0
    %122 = vmatpush1.msra.mxu0 0.0
    %123 = vmatprep.subr.mxu0 0.0
    %124 = vmatpush1.msra.mxu0 0.0
    %125 = vmatprep.subr.mxu0 0.0
    %126 = vmatpush1.msra.mxu0 0.0
    %127 = vmatprep.subr.mxu0 0.0
    %128 = vmatpush1.msra.mxu0 0.0
    %129 = vmatprep.mubr.f32.mxu0 0.0
    %130 = vmatmul.mubr.f32.gmra.mrb[0].mxu0 %v47
    %v131 = vpop.f32.mrb[0].mxu0
    %v132 = vadd.f32 0.0, %v131
    %v133 = vpop.f32.mrb[0].mxu0
    %134 = vmatprep.mubr.f32.mxu0 0.0
    %135 = vmatmul.mubr.f32.gmra.mrb[0].mxu0 %v48
    %v136 = vpop.f32.mrb[0].mxu0
    %v137 = vadd.f32 0.0, %v136
    %v138 = vpop.f32.mrb[0].mxu0
    %139 = vdwg.mxu0
    %140 = vst [vmem:[#allocation5] sm:$0xff] %v132
    %141 = vst [vmem:[#allocation5 + $0x8] sm:$0xff] %v137
    %142 = vmax.xlane.f32.xlu0 %v132
    %v143 = vpop.xlane.xlu0 %142
    %144 = vmax.xlane.f32.xlu0 %v137
    %v145 = vpop.xlane.xlu0 %144
    %v146 = vsub.f32 %v132, %v143
    %v147 = vsub.f32 %v137, %v145
    %v148 = vmul.f32 %v146, 1.442695
    %v149 = vpow.pop %v148
    %v150 = vmul.f32 %v147, 1.442695
    %v151 = vpow.pop %v150
    %152 = vadd.xlane.f32.xlu0 %v149
    %v153 = vpop.xlane.xlu0 %152
    %154 = vadd.xlane.f32.xlu0 %v151
    %v155 = vpop.xlane.xlu0 %154
    %v156 = vlog2.pop %v153
    %v157 = vmul.f32 %v156, 0.6931472
    %v158 = vlog2.pop %v155
    %v159 = vmul.f32 %v158, 0.6931472
    %v160 = vadd.f32 %v157, %v143
    %v161 = vadd.f32 %v159, %v145
    %162 = vset.pattern.permute.xlu0 0
    %163 = vperm.xlu0 %162, %v33
    %v164 = vpop.permute.xlu0 %163
    %165 = vset.pattern.permute.xlu0 0
    %166 = vperm.xlu0 %165, %v34
    %v167 = vpop.permute.xlu0 %166
    %vm168 = vcmp.eq.s32.totalorder %v36, %v164
    %vm169 = vcmp.eq.s32.totalorder %v36, %v167
    %v170 = vsel %vm168, %v132, 0.0
    %v171 = vsel %vm169, %v137, 0.0
    %172 = vadd.xlane.f32.xlu0 %v170
    %v173 = vpop.xlane.xlu0 %172
    %174 = vadd.xlane.f32.xlu0 %v171
    %v175 = vpop.xlane.xlu0 %174
    %v176 = vsub.f32 %v160, %v173
    %v177 = vsub.f32 %v161, %v175
    %vm178 = vcmask 7168
    %179 = vst.msk [vmem:[%s4] sm:$0xff] %vm178, %v176
    %180 = vst.msk [vmem:[%s4 + $0x8] sm:$0xff] %vm178, %v177
    // Predicated region
    $region18: #{tpu_custom_call.1} parent=1 // pred_check
      _
    $region19: #{tpu_custom_call.1} parent=1 // pred_check_branch
      %182 = sbr.rel (0) target = $region21
    $region20: #{tpu_custom_call.1} parent=1 // pred_region
      %s184 = ssub.s32 256, 256
      %185 = vsyncadd [#allocation4], %s184
      %s186 = sshll.u32 [#allocation5], 4
      %s187 = int_to_ptr.vmem [resolvable:$true] %s186
      %192 = dma.vmem_to_hbm [thread:$0]  %s187, 256, %s3, [#allocation4], 128, 128, 8
    $region21: #{tpu_custom_call.1} parent=1 // pred_fallthru
      _
    // Predicated region
    $region22: #{tpu_custom_call.1} parent=1 // pred_check
      _
    $region23: #{tpu_custom_call.1} parent=1 // pred_check_branch
      %194 = sbr.rel (0) target = $region25
    $region24: #{tpu_custom_call.1} parent=1 // pred_region
      _
    $region25: #{tpu_custom_call.1} parent=1 // pred_fallthru
      _
    // Predicated region
    $region26: #{tpu_custom_call.1} parent=1 // pred_check
      _
    $region27: #{tpu_custom_call.1} parent=1 // pred_check_branch
      %196 = sbr.rel (0) target = $region29
    $region28: #{tpu_custom_call.1} parent=1 // pred_region
      %197 = dma.done [#allocation4], 256
    $region29: #{tpu_custom_call.1} parent=1 // pred_fallthru
      _
    // Predicated region
    $region30: #{tpu_custom_call.1} parent=1 // pred_check
      _
    $region31: #{tpu_custom_call.1} parent=1 // pred_check_branch
      %199 = sbr.rel (0) target = $region33
    $region32: #{tpu_custom_call.1} parent=1 // pred_region
      _
    $region33: #{tpu_custom_call.1} parent=1 // pred_fallthru
      _
    %200 = vsyncpa [#allocation3], 1
    %201 = vsyncpa [#allocation4], 1

</llo_original>
